<compile_context>
chip_gen: v5e
topology: v5e:2x2
jax: 0.10.0
libtpu: 0.0.40
codegen_flags: <defaults>
</compile_context>

<pallas_src>
import math

import jax
import jax.numpy as jnp
from jax.experimental import pallas as pl
from jax.experimental.pallas import tpu as pltpu


def _copy_kernel(x_ref, o_ref):
    # Pure lane-dense copy: full-width loads/stores, no relayout, no XLU.
    o_ref[...] = x_ref[...]


def _vmem_budget():
    """Returns (per-block byte budget, scoped-VMEM limit) for this chip."""
    cap = 64 << 20  # conservative fallback = v7x physical VMEM per TensorCore
    try:
        cap = getattr(pltpu.get_tpu_info(), "vmem_capacity_bytes", cap)
    except Exception:  # interpret mode / older runtimes
        pass
    limit = min(cap // 2, 64 << 20)            # never claim more than half of physical VMEM
    # in + out, double-buffered = 4 * block; keep that at <= limit/2 for headroom.
    block = max(2 << 20, min(8 << 20, limit // 8))
    return block, limit


def _pick_tiles(b: int, flat: int, itemsize: int, block_bytes: int):
    # Sublane (batch) tile: 8 rows (or the full extent when b < 8) so each DMA
    # segment along the contiguous lane axis is as long as possible.
    tb = b if b < 8 else 8

    # Lane (flat) tile: as large as the budget allows, multiple of 128 (or the
    # full extent when flat <= 128).  Non-128-aligned flat keeps a 128-multiple
    # tile; the ragged last grid column is edge-masked by Pallas.
    if flat <= 128:
        tf = flat
    else:
        lane_budget = max(128, (block_bytes // (tb * itemsize)) // 128 * 128)
        aligned_flat = flat if flat % 128 == 0 else (flat // 128) * 128
        tf = min(aligned_flat, lane_budget)

    # If the lane axis is already covered and budget remains, grow the sublane
    # tile in multiples of 8 to amortize the ~0.35us per-grid-step overhead.
    while tb + 8 <= b and (tb + 8) * tf * itemsize <= block_bytes:
        tb += 8

    # v7x megacore: keep >= 2 grid steps on a "parallel" axis for non-trivial
    # inputs so the copy shards across both TensorCores.
    if (math.ceil(b / tb) == 1 and math.ceil(flat / tf) == 1
            and b * flat * itemsize >= (2 << 20)):
        if b >= 16:
            tb = max(8, ((b // 2 + 7) // 8) * 8)
        elif flat >= 256:
            tf = max(128, (flat // 2 // 128) * 128)

    return tb, tf


def view_features(x: jax.Array) -> jax.Array:
    """Pallas equivalent of PyTorch `x.view(x.shape[0], -1)`."""
    b = x.shape[0]
    flat = math.prod(x.shape[1:]) if x.ndim > 1 else 1

    # Row-major flatten is a metadata-only view in XLA; doing it here means the
    # kernel input is already lane-dense (last dim = flat).
    x2d = jnp.reshape(x, (b, flat))

    block_bytes, vmem_limit = _vmem_budget()
    tb, tf = _pick_tiles(b, flat, x2d.dtype.itemsize, block_bytes)
    grid = (pl.cdiv(b, tb), pl.cdiv(flat, tf))
    nbytes = b * flat * x2d.dtype.itemsize

    # TODO(synk): when no fusion anchor is required, `return x2d` (pure
    # metadata view) is strictly cheaper than any kernel.
    return pl.pallas_call(
        _copy_kernel,
        out_shape=jax.ShapeDtypeStruct((b, flat), x.dtype),
        grid=grid,
        in_specs=[pl.BlockSpec((tb, tf), lambda i, j: (i, j))],
        out_specs=pl.BlockSpec((tb, tf), lambda i, j: (i, j)),
        input_output_aliases={0: 0},
        compiler_params=pltpu.CompilerParams(
            dimension_semantics=("parallel", "parallel"),
            vmem_limit_bytes=vmem_limit,
        ),
        cost_estimate=pl.CostEstimate(
            flops=0, transcendentals=0, bytes_accessed=2 * nbytes),
    )(x2d)


if __name__ == "__main__":
    key = jax.random.PRNGKey(0)
    # Small NCHW conv-feature-map style input: (B, C, H, W)
    x = jax.random.normal(key, (2, 4, 16, 16), dtype=jnp.float32)

    out = view_features(x)
    jax.block_until_ready(out)

    # Reference check against plain reshape (same semantics as torch .view).
    ref = x.reshape(x.shape[0], -1)
    assert out.shape == (2, 4 * 16 * 16), out.shape
    assert jnp.array_equal(out, ref), "mismatch vs reference flatten"

    print("KERNEL_OK")
</pallas_src>

<mosaic_0001>
module attributes {stable_mosaic.version = 11 : i64} {
  func.func @_copy_kernel(%arg0: i32, %arg1: i32, %arg2: memref<2x1024xf32, #tpu.memory_space<vmem>>, %arg3: memref<2x1024xf32, #tpu.memory_space<vmem>>) attributes {dimension_semantics = [#tpu.dimension_semantics<parallel>, #tpu.dimension_semantics<parallel>], iteration_bounds = array<i64: 1, 1>, scalar_prefetch = 0 : i64, scratch_operands = 0 : i64, tpu.core_type = #tpu.core_type<tc>, window_params = [{transform_indices = @transform_0, window_bounds = array<i64: 2, 1024>}, {transform_indices = @transform_1, window_bounds = array<i64: 2, 1024>}]} {
    %c0 = arith.constant 0 : index
    %c0_0 = arith.constant 0 : index
    %0 = vector.load %arg2[%c0, %c0_0] : memref<2x1024xf32, #tpu.memory_space<vmem>>, vector<2x1024xf32>
    %c0_1 = arith.constant 0 : index
    %c0_2 = arith.constant 0 : index
    %1 = vector.load %arg3[%c0_1, %c0_2] : memref<2x1024xf32, #tpu.memory_space<vmem>>, vector<2x1024xf32>
    tpu.vector_store %arg3[%c0_1, %c0_2], %0 {strides = array<i32>} : memref<2x1024xf32, #tpu.memory_space<vmem>>, vector<2x1024xf32>,
    return
  }
  func.func @transform_0(%arg0: i32, %arg1: i32) -> (i32, i32) {
    %c0_i32 = arith.constant 0 : i32
    return %arg0, %arg1 : i32, i32
  }
  func.func @transform_1(%arg0: i32, %arg1: i32) -> (i32, i32) {
    %c0_i32 = arith.constant 0 : i32
    return %arg0, %arg1 : i32, i32
  }
}

</mosaic_0001>

<llo_original>
// kernel: tpu_custom_call.1
$region0: #{tpu_custom_call.1}
  #allocation0 [shape = 'u32[]', space=smem, size = 0x4, offset = 0x4, fixed_abs, tag = 'smem constant byte address 0x4 - core index']
  #allocation1 [shape = 'u32[72,128]{1,0:T(1,128)}', space=vmem, size = 0x9000, scoped, tag = 'internal scratch']
  %s0 = inlined_call_operand.hbm [shape: f32[2,1024], index: 0, kind: input, shape index: {}, may-alias: {0,1}]
  %s1 = inlined_call_operand.hbm [shape: f32[2,1024], index: 1, kind: output, shape index: {}, may-alias: {0,1}]
  %s2 = sld [smem:[#allocation0]]
  $region18: #{tpu_custom_call.1} parent=0
    _
  %s4 = ssub.s32 1, %s2
  %s5 = scalar_select 0, %s4, %s2
  $region1: #{tpu_custom_call.1} parent=0
    #allocation2 [shape = 'u8[8192]{0}', space=vmem, size = 0x2000, scoped, tag = 'input window, operand 0, single buffered']
    #allocation3 [shape = 's32[1]{0}', space=sflag, size = 0x4, scoped, tag = 'scoped memory for tpu_custom_call.1']
    #allocation4 [shape = 's32[1]{0}', space=sflag, size = 0x4, scoped, tag = 'scoped memory for tpu_custom_call.1']
    #allocation5 [shape = 'u8[8192]{0}', space=vmem, size = 0x2000, scoped, tag = 'output window, operand 0, single buffered']
    %6 = vsyncpa [#allocation3], 0
    %7 = vsyncpa [#allocation4], 0
    // Predicated region
    $region2: #{tpu_custom_call.1} parent=1 // pred_check
      _
    $region3: #{tpu_custom_call.1} parent=1 // pred_check_branch
      %9 = sbr.rel (0) target = $region5
    $region4: #{tpu_custom_call.1} parent=1 // pred_region
      %11 = vsyncadd [#allocation3], 0
      %s13 = sshll.u32 %s0, 4
      %s14 = int_to_ptr.hbm [resolvable:$true] %s13
      %s15 = sshll.u32 [#allocation2], 4
      %s16 = int_to_ptr.vmem [resolvable:$true] %s15
      %18 = dma.hbm_to_vmem [thread:$0]  %s14, 256, %s16, [#allocation3]
    $region5: #{tpu_custom_call.1} parent=1 // pred_fallthru
      _
    // Predicated region
    $region6: #{tpu_custom_call.1} parent=1 // pred_check
      _
    $region7: #{tpu_custom_call.1} parent=1 // pred_check_branch
      %20 = sbr.rel (0) target = $region9
    $region8: #{tpu_custom_call.1} parent=1 // pred_region
      %22 = dma.done [#allocation3], 256
    $region9: #{tpu_custom_call.1} parent=1 // pred_fallthru
      _
    %v23 = vld [vmem:[#allocation2] sm:$0xff]
    %v24 = vld [vmem:[#allocation2 + $0x8] sm:$0xff]
    %25 = vst [vmem:[#allocation5] sm:$0xff] %v23
    %26 = vst [vmem:[#allocation5 + $0x8] sm:$0xff] %v24
    // Predicated region
    $region10: #{tpu_custom_call.1} parent=1 // pred_check
      _
    $region11: #{tpu_custom_call.1} parent=1 // pred_check_branch
      %28 = sbr.rel (0) target = $region13
    $region12: #{tpu_custom_call.1} parent=1 // pred_region
      %30 = vsyncadd [#allocation4], 0
      %s32 = sshll.u32 [#allocation5], 4
      %s33 = int_to_ptr.vmem [resolvable:$true] %s32
      %s34 = sshll.u32 %s1, 4
      %s35 = int_to_ptr.hbm [resolvable:$true] %s34
      %37 = dma.vmem_to_hbm [thread:$0]  %s33, 256, %s35, [#allocation4]
    $region13: #{tpu_custom_call.1} parent=1 // pred_fallthru
      _
    // Predicated region
    $region14: #{tpu_custom_call.1} parent=1 // pred_check
      _
    $region15: #{tpu_custom_call.1} parent=1 // pred_check_branch
      %39 = sbr.rel (0) target = $region17
    $region16: #{tpu_custom_call.1} parent=1 // pred_region
      %41 = dma.done [#allocation4], 256
    $region17: #{tpu_custom_call.1} parent=1 // pred_fallthru
      _
    %42 = vsyncpa [#allocation3], 1
    %43 = vsyncpa [#allocation4], 1

</llo_original>
